<compile_context>
chip_gen: v6e
topology: v6e:2x2x1
jax: 0.10.0
libtpu: 0.0.40
codegen_flags: <defaults>
</compile_context>

<pallas_src>
import functools
import math

import jax
import jax.numpy as jnp
from jax.experimental import pallas as pl
from jax.experimental.pallas import tpu as pltpu


def _cdiv(a, b):
    return -(-a // b)


def _round_down(v, m):
    return (v // m) * m


def _round_up(v, m):
    return _cdiv(v, m) * m


def _layernorm_kernel(x_ref, w_ref, b_ref, o_ref, *, eps):
    """Generic path: one logical row per block row. x_ref: (tile_r, D)."""
    x = x_ref[...].astype(jnp.float32)
    u = jnp.mean(x, axis=-1, keepdims=True)
    d = x - u
    s = jnp.mean(d * d, axis=-1, keepdims=True)   # biased variance (matches torch)
    inv = jax.lax.rsqrt(s + eps)                  # EUP path
    w = w_ref[...].astype(jnp.float32)
    b = b_ref[...].astype(jnp.float32)
    o_ref[...] = (w * (d * inv) + b).astype(o_ref.dtype)


def _layernorm_packed_kernel(x_ref, w_ref, b_ref, o_ref, *, eps, d, pack):
    """Lane-packed path: each 128-lane block row holds `pack` logical rows of
    width d (pack * d == 128).  Static segment loop (pack <= 16)."""
    x = x_ref[...].astype(jnp.float32)            # (tile_r, pack*d)
    w = w_ref[...].astype(jnp.float32)            # (1, d) — shared by all segments
    b = b_ref[...].astype(jnp.float32)
    for j in range(pack):
        lo, hi = j * d, (j + 1) * d
        xs = x[:, lo:hi]
        u = jnp.mean(xs, axis=-1, keepdims=True)
        dc = xs - u
        s = jnp.mean(dc * dc, axis=-1, keepdims=True)
        inv = jax.lax.rsqrt(s + eps)
        o_ref[:, lo:hi] = (w * (dc * inv) + b).astype(o_ref.dtype)


def layer_norm(x, weight, bias, *, eps=1e-12):
    """LayerNorm over the last axis of x. weight/bias have shape (hidden,)."""
    orig_shape = x.shape
    D = orig_shape[-1]
    R = 1
    for dim in orig_shape[:-1]:
        R *= dim
    R = max(R, 1)

    itemsize = jnp.dtype(x.dtype).itemsize
    sub = max(8, 32 // itemsize)                  # sublane multiple: 8 f32 / 16 bf16 / 32 i8

    # ---- generation-aware VMEM budget --------------------------------------
    try:
        vmem_cap = int(getattr(pltpu.get_tpu_info(), "vmem_capacity_bytes", 64 << 20))
    except Exception:
        vmem_cap = 64 << 20                       # conservative: v7x per-TC VMEM
    # ~72% of physical for the pipeline tiles; clip to [32 MiB, 96 MiB].
    budget = min(96 << 20, max(32 << 20, int(vmem_cap * 0.72)))
    vmem_limit = int(min(int(vmem_cap * 0.85), budget + (8 << 20)))

    # ---- lane packing for small hidden sizes -------------------------------
    pack = 1
    if D < 128 and (128 % D == 0) and D >= 8:
        pack = 128 // D
    L = pack * D                                  # lane width of one block row
    R_pad = _round_up(R, pack)
    R_rows = R_pad // pack                        # block rows after packing

    # ---- adaptive tile_r: 2 in + 2 out double-buffered tiles must fit ------
    tile_cap = budget // (4 * L * itemsize)
    tile_cap = max(sub, _round_down(min(tile_cap, 2048), sub))

    if R_rows <= sub:
        tile_r = R_rows                           # full extent (always legal)
    else:
        tile_r = min(tile_cap, _round_down(R_rows, sub))
        # guarantee >=2 grid steps so both v7x TensorCores get work
        if _cdiv(R_rows, tile_r) < 2:
            tile_r = min(tile_cap, max(sub, _round_up(_cdiv(R_rows, 2), sub)))

    grid = (_cdiv(R_rows, tile_r),)

    # ---- prepare inputs (no up-cast; reshapes are free row-major views) ----
    x2 = x.reshape(R, D)
    if pack > 1:
        if R_pad != R:
            x2 = jnp.pad(x2, ((0, R_pad - R), (0, 0)))
        xk = x2.reshape(R_rows, L)
    else:
        xk = x2
    w2 = weight.reshape(1, D)
    b2 = bias.reshape(1, D)

    if pack > 1:
        kernel = functools.partial(_layernorm_packed_kernel, eps=eps, d=D, pack=pack)
    else:
        kernel = functools.partial(_layernorm_kernel, eps=eps)

    cost = pl.CostEstimate(
        flops=7 * R_pad * D,
        transcendentals=R_pad,                    # one rsqrt per logical row
        bytes_accessed=(2 * R_pad * D + 2 * D) * itemsize,
    )

    out = pl.pallas_call(
        kernel,
        out_shape=jax.ShapeDtypeStruct((R_rows, L), x.dtype),
        grid=grid,
        in_specs=[
            pl.BlockSpec((tile_r, L), lambda i: (i, 0)),
            pl.BlockSpec((1, D), lambda i: (0, 0)),
            pl.BlockSpec((1, D), lambda i: (0, 0)),
        ],
        out_specs=pl.BlockSpec((tile_r, L), lambda i: (i, 0)),
        compiler_params=pltpu.CompilerParams(
            dimension_semantics=("parallel",),
            vmem_limit_bytes=vmem_limit,
        ),
        cost_estimate=cost,
    )(xk, w2, b2)

    if pack > 1:
        out = out.reshape(R_pad, D)[:R]
    return out.reshape(orig_shape)


def _reference(x, weight, bias, eps=1e-12):
    u = jnp.mean(x, axis=-1, keepdims=True)
    s = jnp.mean((x - u) ** 2, axis=-1, keepdims=True)
    y = (x - u) / jnp.sqrt(s + eps)
    return weight * y + bias


if __name__ == "__main__":
    seq, bsz, hidden = 8, 2, 32

    key = jax.random.PRNGKey(0)
    kx, kw, kb = jax.random.split(key, 3)
    x = jax.random.normal(kx, (seq, bsz, hidden), dtype=jnp.float32)
    # Non-trivial affine params to exercise the scale/shift path
    # (module init is weight=1, bias=0; forward semantics are identical).
    weight = 1.0 + 0.1 * jax.random.normal(kw, (hidden,), dtype=jnp.float32)
    bias = 0.1 * jax.random.normal(kb, (hidden,), dtype=jnp.float32)

    out = layer_norm(x, weight, bias, eps=1e-12)
    out = jax.block_until_ready(out)

    ref = _reference(x, weight, bias, eps=1e-12)
    assert out.shape == x.shape
    assert out.dtype == x.dtype
    assert jnp.allclose(out, ref, atol=1e-5, rtol=1e-5), "mismatch vs reference"

    print("KERNEL_OK")
</pallas_src>

<mosaic_0001>
module attributes {stable_mosaic.version = 11 : i64} {
  func.func @_layernorm_packed_kernel(%arg0: i32, %arg1: memref<4x128xf32, #tpu.memory_space<vmem>>, %arg2: memref<1x32xf32, #tpu.memory_space<vmem>>, %arg3: memref<1x32xf32, #tpu.memory_space<vmem>>, %arg4: memref<4x128xf32, #tpu.memory_space<vmem>>) attributes {dimension_semantics = [#tpu.dimension_semantics<parallel>], iteration_bounds = array<i64: 1>, scalar_prefetch = 0 : i64, scratch_operands = 0 : i64, tpu.core_type = #tpu.core_type<tc>, window_params = [{transform_indices = @transform_0, window_bounds = array<i64: 4, 128>}, {pipeline_mode = #tpu.pipeline_mode<synchronous>, transform_indices = @transform_1, window_bounds = array<i64: 1, 32>}, {pipeline_mode = #tpu.pipeline_mode<synchronous>, transform_indices = @transform_2, window_bounds = array<i64: 1, 32>}, {transform_indices = @transform_3, window_bounds = array<i64: 4, 128>}]} {
    %c0 = arith.constant 0 : index
    %c0_0 = arith.constant 0 : index
    %0 = vector.load %arg1[%c0, %c0_0] : memref<4x128xf32, #tpu.memory_space<vmem>>, vector<4x128xf32>
    %c0_1 = arith.constant 0 : index
    %c0_2 = arith.constant 0 : index
    %1 = vector.load %arg2[%c0_1, %c0_2] : memref<1x32xf32, #tpu.memory_space<vmem>>, vector<1x32xf32>
    %c0_3 = arith.constant 0 : index
    %c0_4 = arith.constant 0 : index
    %2 = vector.load %arg3[%c0_3, %c0_4] : memref<1x32xf32, #tpu.memory_space<vmem>>, vector<1x32xf32>
    %3 = vector.extract_strided_slice %0 {offsets = [0, 0], sizes = [4, 32], strides = [1, 1]} : vector<4x128xf32> to vector<4x32xf32>
    %cst = arith.constant dense<0.000000e+00> : vector<4xf32>
    %4 = vector.multi_reduction <add>, %3, %cst [1] : vector<4x32xf32> to vector<4xf32>
    %5 = vector.shape_cast %4 : vector<4xf32> to vector<4x1xf32>
    %cst_5 = arith.constant 3.200000e+01 : f32
    %6 = vector.broadcast %cst_5 : f32 to vector<4x1xf32>
    %7 = arith.divf %5, %6 : vector<4x1xf32>
    %8 = vector.broadcast %7 : vector<4x1xf32> to vector<4x32xf32>
    %9 = arith.subf %3, %8 : vector<4x32xf32>
    %10 = arith.mulf %9, %9 : vector<4x32xf32>
    %cst_6 = arith.constant dense<0.000000e+00> : vector<4xf32>
    %11 = vector.multi_reduction <add>, %10, %cst_6 [1] : vector<4x32xf32> to vector<4xf32>
    %12 = vector.shape_cast %11 : vector<4xf32> to vector<4x1xf32>
    %cst_7 = arith.constant 3.200000e+01 : f32
    %13 = vector.broadcast %cst_7 : f32 to vector<4x1xf32>
    %14 = arith.divf %12, %13 : vector<4x1xf32>
    %cst_8 = arith.constant 9.99999996E-13 : f32
    %15 = vector.broadcast %cst_8 : f32 to vector<4x1xf32>
    %16 = arith.addf %14, %15 : vector<4x1xf32>
    %17 = math.rsqrt %16 : vector<4x1xf32>
    %18 = vector.broadcast %17 : vector<4x1xf32> to vector<4x32xf32>
    %19 = arith.mulf %9, %18 : vector<4x32xf32>
    %20 = vector.broadcast %1 : vector<1x32xf32> to vector<4x32xf32>
    %21 = arith.mulf %20, %19 : vector<4x32xf32>
    %22 = vector.broadcast %2 : vector<1x32xf32> to vector<4x32xf32>
    %23 = arith.addf %21, %22 : vector<4x32xf32>
    %c0_9 = arith.constant 0 : index
    %c0_10 = arith.constant 0 : index
    %24 = vector.load %arg4[%c0_9, %c0_10] : memref<4x128xf32, #tpu.memory_space<vmem>>, vector<4x32xf32>
    tpu.vector_store %arg4[%c0_9, %c0_10], %23 {strides = array<i32>} : memref<4x128xf32, #tpu.memory_space<vmem>>, vector<4x32xf32>,
    %25 = vector.extract_strided_slice %0 {offsets = [0, 32], sizes = [4, 32], strides = [1, 1]} : vector<4x128xf32> to vector<4x32xf32>
    %cst_11 = arith.constant dense<0.000000e+00> : vector<4xf32>
    %26 = vector.multi_reduction <add>, %25, %cst_11 [1] : vector<4x32xf32> to vector<4xf32>
    %27 = vector.shape_cast %26 : vector<4xf32> to vector<4x1xf32>
    %cst_12 = arith.constant 3.200000e+01 : f32
    %28 = vector.broadcast %cst_12 : f32 to vector<4x1xf32>
    %29 = arith.divf %27, %28 : vector<4x1xf32>
    %30 = vector.broadcast %29 : vector<4x1xf32> to vector<4x32xf32>
    %31 = arith.subf %25, %30 : vector<4x32xf32>
    %32 = arith.mulf %31, %31 : vector<4x32xf32>
    %cst_13 = arith.constant dense<0.000000e+00> : vector<4xf32>
    %33 = vector.multi_reduction <add>, %32, %cst_13 [1] : vector<4x32xf32> to vector<4xf32>
    %34 = vector.shape_cast %33 : vector<4xf32> to vector<4x1xf32>
    %cst_14 = arith.constant 3.200000e+01 : f32
    %35 = vector.broadcast %cst_14 : f32 to vector<4x1xf32>
    %36 = arith.divf %34, %35 : vector<4x1xf32>
    %cst_15 = arith.constant 9.99999996E-13 : f32
    %37 = vector.broadcast %cst_15 : f32 to vector<4x1xf32>
    %38 = arith.addf %36, %37 : vector<4x1xf32>
    %39 = math.rsqrt %38 : vector<4x1xf32>
    %40 = vector.broadcast %39 : vector<4x1xf32> to vector<4x32xf32>
    %41 = arith.mulf %31, %40 : vector<4x32xf32>
    %42 = vector.broadcast %1 : vector<1x32xf32> to vector<4x32xf32>
    %43 = arith.mulf %42, %41 : vector<4x32xf32>
    %44 = vector.broadcast %2 : vector<1x32xf32> to vector<4x32xf32>
    %45 = arith.addf %43, %44 : vector<4x32xf32>
    %c0_16 = arith.constant 0 : index
    %c32 = arith.constant 32 : index
    %46 = vector.load %arg4[%c0_16, %c32] : memref<4x128xf32, #tpu.memory_space<vmem>>, vector<4x32xf32>
    tpu.vector_store %arg4[%c0_16, %c32], %45 {strides = array<i32>} : memref<4x128xf32, #tpu.memory_space<vmem>>, vector<4x32xf32>,
    %47 = vector.extract_strided_slice %0 {offsets = [0, 64], sizes = [4, 32], strides = [1, 1]} : vector<4x128xf32> to vector<4x32xf32>
    %cst_17 = arith.constant dense<0.000000e+00> : vector<4xf32>
    %48 = vector.multi_reduction <add>, %47, %cst_17 [1] : vector<4x32xf32> to vector<4xf32>
    %49 = vector.shape_cast %48 : vector<4xf32> to vector<4x1xf32>
    %cst_18 = arith.constant 3.200000e+01 : f32
    %50 = vector.broadcast %cst_18 : f32 to vector<4x1xf32>
    %51 = arith.divf %49, %50 : vector<4x1xf32>
    %52 = vector.broadcast %51 : vector<4x1xf32> to vector<4x32xf32>
    %53 = arith.subf %47, %52 : vector<4x32xf32>
    %54 = arith.mulf %53, %53 : vector<4x32xf32>
    %cst_19 = arith.constant dense<0.000000e+00> : vector<4xf32>
    %55 = vector.multi_reduction <add>, %54, %cst_19 [1] : vector<4x32xf32> to vector<4xf32>
    %56 = vector.shape_cast %55 : vector<4xf32> to vector<4x1xf32>
    %cst_20 = arith.constant 3.200000e+01 : f32
    %57 = vector.broadcast %cst_20 : f32 to vector<4x1xf32>
    %58 = arith.divf %56, %57 : vector<4x1xf32>
    %cst_21 = arith.constant 9.99999996E-13 : f32
    %59 = vector.broadcast %cst_21 : f32 to vector<4x1xf32>
    %60 = arith.addf %58, %59 : vector<4x1xf32>
    %61 = math.rsqrt %60 : vector<4x1xf32>
    %62 = vector.broadcast %61 : vector<4x1xf32> to vector<4x32xf32>
    %63 = arith.mulf %53, %62 : vector<4x32xf32>
    %64 = vector.broadcast %1 : vector<1x32xf32> to vector<4x32xf32>
    %65 = arith.mulf %64, %63 : vector<4x32xf32>
    %66 = vector.broadcast %2 : vector<1x32xf32> to vector<4x32xf32>
    %67 = arith.addf %65, %66 : vector<4x32xf32>
    %c0_22 = arith.constant 0 : index
    %c64 = arith.constant 64 : index
    %68 = vector.load %arg4[%c0_22, %c64] : memref<4x128xf32, #tpu.memory_space<vmem>>, vector<4x32xf32>
    tpu.vector_store %arg4[%c0_22, %c64], %67 {strides = array<i32>} : memref<4x128xf32, #tpu.memory_space<vmem>>, vector<4x32xf32>,
    %69 = vector.extract_strided_slice %0 {offsets = [0, 96], sizes = [4, 32], strides = [1, 1]} : vector<4x128xf32> to vector<4x32xf32>
    %cst_23 = arith.constant dense<0.000000e+00> : vector<4xf32>
    %70 = vector.multi_reduction <add>, %69, %cst_23 [1] : vector<4x32xf32> to vector<4xf32>
    %71 = vector.shape_cast %70 : vector<4xf32> to vector<4x1xf32>
    %cst_24 = arith.constant 3.200000e+01 : f32
    %72 = vector.broadcast %cst_24 : f32 to vector<4x1xf32>
    %73 = arith.divf %71, %72 : vector<4x1xf32>
    %74 = vector.broadcast %73 : vector<4x1xf32> to vector<4x32xf32>
    %75 = arith.subf %69, %74 : vector<4x32xf32>
    %76 = arith.mulf %75, %75 : vector<4x32xf32>
    %cst_25 = arith.constant dense<0.000000e+00> : vector<4xf32>
    %77 = vector.multi_reduction <add>, %76, %cst_25 [1] : vector<4x32xf32> to vector<4xf32>
    %78 = vector.shape_cast %77 : vector<4xf32> to vector<4x1xf32>
    %cst_26 = arith.constant 3.200000e+01 : f32
    %79 = vector.broadcast %cst_26 : f32 to vector<4x1xf32>
    %80 = arith.divf %78, %79 : vector<4x1xf32>
    %cst_27 = arith.constant 9.99999996E-13 : f32
    %81 = vector.broadcast %cst_27 : f32 to vector<4x1xf32>
    %82 = arith.addf %80, %81 : vector<4x1xf32>
    %83 = math.rsqrt %82 : vector<4x1xf32>
    %84 = vector.broadcast %83 : vector<4x1xf32> to vector<4x32xf32>
    %85 = arith.mulf %75, %84 : vector<4x32xf32>
    %86 = vector.broadcast %1 : vector<1x32xf32> to vector<4x32xf32>
    %87 = arith.mulf %86, %85 : vector<4x32xf32>
    %88 = vector.broadcast %2 : vector<1x32xf32> to vector<4x32xf32>
    %89 = arith.addf %87, %88 : vector<4x32xf32>
    %c0_28 = arith.constant 0 : index
    %c96 = arith.constant 96 : index
    %90 = vector.load %arg4[%c0_28, %c96] : memref<4x128xf32, #tpu.memory_space<vmem>>, vector<4x32xf32>
    tpu.vector_store %arg4[%c0_28, %c96], %89 {strides = array<i32>} : memref<4x128xf32, #tpu.memory_space<vmem>>, vector<4x32xf32>,
    return
  }
  func.func @transform_0(%arg0: i32) -> (i32, i32) {
    %c0_i32 = arith.constant 0 : i32
    %c0_i32_0 = arith.constant 0 : i32
    return %arg0, %c0_i32 : i32, i32
  }
  func.func @transform_1(%arg0: i32) -> (i32, i32) {
    %c0_i32 = arith.constant 0 : i32
    %c0_i32_0 = arith.constant 0 : i32
    %c0_i32_1 = arith.constant 0 : i32
    return %c0_i32, %c0_i32_0 : i32, i32
  }
  func.func @transform_2(%arg0: i32) -> (i32, i32) {
    %c0_i32 = arith.constant 0 : i32
    %c0_i32_0 = arith.constant 0 : i32
    %c0_i32_1 = arith.constant 0 : i32
    return %c0_i32, %c0_i32_0 : i32, i32
  }
  func.func @transform_3(%arg0: i32) -> (i32, i32) {
    %c0_i32 = arith.constant 0 : i32
    %c0_i32_0 = arith.constant 0 : i32
    return %arg0, %c0_i32 : i32, i32
  }
}

</mosaic_0001>

<llo_original>
// kernel: tpu_custom_call.1
$region0: #{tpu_custom_call.1}
  #allocation0 [shape = 'u32[]', space=smem, size = 0x4, offset = 0x4, fixed_abs, tag = 'smem constant byte address 0x4 - core index']
  #allocation1 [shape = 'u32[144,128]{1,0:T(1,128)}', space=vmem, size = 0x12000, scoped, tag = 'internal scratch']
  %s0 = inlined_call_operand.hbm [shape: f32[4,128], index: 0, kind: input, shape index: {}]
  %s1 = inlined_call_operand.vmem [shape: f32[1,32], index: 1, kind: input, shape index: {}]
  %s2 = inlined_call_operand.vmem [shape: f32[1,32], index: 2, kind: input, shape index: {}]
  %s3 = inlined_call_operand.hbm [shape: f32[4,128], index: 3, kind: output, shape index: {}]
  %s4 = sld [smem:[#allocation0]]
  $region26: #{tpu_custom_call.1} parent=0
    _
  %s6 = ssub.s32 1, %s4
  %s7 = scalar_select 0, %s6, %s4
  $region1: #{tpu_custom_call.1} parent=0
    #allocation2 [shape = 'u8[2048]{0}', space=vmem, size = 0x800, scoped, tag = 'input window, operand 0, single buffered']
    #allocation3 [shape = 's32[1]{0}', space=sflag, size = 0x4, scoped, tag = 'scoped memory for tpu_custom_call.1']
    #allocation4 [shape = 's32[1]{0}', space=sflag, size = 0x4, scoped, tag = 'scoped memory for tpu_custom_call.1']
    #allocation5 [shape = 'u8[2048]{0}', space=vmem, size = 0x800, scoped, tag = 'output window, operand 0, single buffered']
    %8 = vsyncpa [#allocation3], 0
    %9 = vsyncpa [#allocation4], 0
    // Predicated region
    $region2: #{tpu_custom_call.1} parent=1 // pred_check
      _
    $region3: #{tpu_custom_call.1} parent=1 // pred_check_branch
      %11 = sbr.rel (0) target = $region5
    $region4: #{tpu_custom_call.1} parent=1 // pred_region
      %s13 = ssub.s32 64, 64
      %14 = vsyncadd [#allocation3], %s13
      %s16 = sshll.u32 [#allocation2], 4
      %s17 = int_to_ptr.vmem [resolvable:$true] %s16
      %19 = dma.hbm_to_vmem [thread:$0]  %s0, 64, %s17, [#allocation3]
    $region5: #{tpu_custom_call.1} parent=1 // pred_fallthru
      _
    // Predicated region
    $region6: #{tpu_custom_call.1} parent=1 // pred_check
      _
    $region7: #{tpu_custom_call.1} parent=1 // pred_check_branch
      %21 = sbr.rel (0) target = $region9
    $region8: #{tpu_custom_call.1} parent=1 // pred_region
      _
    $region9: #{tpu_custom_call.1} parent=1 // pred_fallthru
      _
    // Predicated region
    $region10: #{tpu_custom_call.1} parent=1 // pred_check
      _
    $region11: #{tpu_custom_call.1} parent=1 // pred_check_branch
      %23 = sbr.rel (0) target = $region13
    $region12: #{tpu_custom_call.1} parent=1 // pred_region
      _
    $region13: #{tpu_custom_call.1} parent=1 // pred_fallthru
      _
    // Predicated region
    $region14: #{tpu_custom_call.1} parent=1 // pred_check
      _
    $region15: #{tpu_custom_call.1} parent=1 // pred_check_branch
      %25 = sbr.rel (0) target = $region17
    $region16: #{tpu_custom_call.1} parent=1 // pred_region
      %26 = dma.done [#allocation3], 64
    $region17: #{tpu_custom_call.1} parent=1 // pred_fallthru
      _
    %v27 = vld [vmem:[#allocation2] sm:$0xf]
    %v28 = vld [vmem:[%s1] sm:$0x1]
    %v29 = vld [vmem:[%s2] sm:$0x1]
    %vm30 = vcmask 257024
    %v31 = vsel %vm30, %v27, 0.0
    %32 = vadd.xlane.f32.xlu0 %v31
    %v33 = vpop.xlane.xlu0 %32
    %v34 = vrcp.pop 32.0
    %v35 = vmul.f32 %v33, %v34
    %v36 = vsub.f32 %v27, %v35
    %v37 = vmul.f32 %v36, %v36
    %v38 = vsel %vm30, %v37, 0.0
    %39 = vadd.xlane.f32.xlu0 %v38
    %v40 = vpop.xlane.xlu0 %39
    %v41 = vmul.f32 %v40, %v34
    %v42 = vadd.f32 %v41, 1e-12
    %v43 = vrsqrt.pop %v42
    %v44 = vmul.f32 %v36, %v43
    %v46 = vlaneseq
    %v47 = vshrl.u32 %v46, 7
    %v48 = vsub.s32 0, %v47
    %v49 = vrot.slane %v28, %v48
    %v51 = vmul.f32 %v49, %v44
    %v53 = vlaneseq
    %v54 = vshrl.u32 %v53, 7
    %v55 = vsub.s32 0, %v54
    %v56 = vrot.slane %v29, %v55
    %v58 = vadd.f32 %v51, %v56
    %59 = vst.msk [vmem:[#allocation5] sm:$0xf] %vm30, %v58
    %61 = vrot.lane.b32.xlu0 %v27, 96
    %v62 = vpop.permute.xlu0 %61
    %v64 = vsel %vm30, %v62, 0.0
    %65 = vadd.xlane.f32.xlu0 %v64
    %v66 = vpop.xlane.xlu0 %65
    %v67 = vmul.f32 %v66, %v34
    %v68 = vsub.f32 %v27, %v67
    %v69 = vmul.f32 %v68, %v68
    %71 = vrot.lane.b32.xlu0 %v69, 96
    %v72 = vpop.permute.xlu0 %71
    %v74 = vsel %vm30, %v72, 0.0
    %75 = vadd.xlane.f32.xlu0 %v74
    %v76 = vpop.xlane.xlu0 %75
    %v77 = vmul.f32 %v76, %v34
    %v78 = vadd.f32 %v77, 1e-12
    %v79 = vrsqrt.pop %v78
    %v80 = vmul.f32 %v68, %v79
    %82 = vrot.lane.b32.xlu0 %v80, 96
    %v83 = vpop.permute.xlu0 %82
    %v85 = vmul.f32 %v49, %v83
    %v86 = vadd.f32 %v85, %v56
    %88 = vrot.lane.b32.xlu0 %v86, 32
    %v89 = vpop.permute.xlu0 %88
    %vm91 = vcmask 519424
    %92 = vst.msk [vmem:[#allocation5] sm:$0xf] %vm91, %v89
    %93 = vrot.lane.b32.xlu0 %v27, 64
    %v94 = vpop.permute.xlu0 %93
    %v96 = vsel %vm30, %v94, 0.0
    %97 = vadd.xlane.f32.xlu0 %v96
    %v98 = vpop.xlane.xlu0 %97
    %v99 = vmul.f32 %v98, %v34
    %v100 = vsub.f32 %v27, %v99
    %v101 = vmul.f32 %v100, %v100
    %103 = vrot.lane.b32.xlu0 %v101, 64
    %v104 = vpop.permute.xlu0 %103
    %v106 = vsel %vm30, %v104, 0.0
    %107 = vadd.xlane.f32.xlu0 %v106
    %v108 = vpop.xlane.xlu0 %107
    %v109 = vmul.f32 %v108, %v34
    %v110 = vadd.f32 %v109, 1e-12
    %v111 = vrsqrt.pop %v110
    %v112 = vmul.f32 %v100, %v111
    %114 = vrot.lane.b32.xlu0 %v112, 64
    %v115 = vpop.permute.xlu0 %114
    %v117 = vmul.f32 %v49, %v115
    %v118 = vadd.f32 %v117, %v56
    %120 = vrot.lane.b32.xlu0 %v118, 64
    %v121 = vpop.permute.xlu0 %120
    %vm123 = vcmask 781824
    %124 = vst.msk [vmem:[#allocation5] sm:$0xf] %vm123, %v121
    %125 = vrot.lane.b32.xlu0 %v27, 32
    %v126 = vpop.permute.xlu0 %125
    %v128 = vsel %vm30, %v126, 0.0
    %129 = vadd.xlane.f32.xlu0 %v128
    %v130 = vpop.xlane.xlu0 %129
    %v131 = vmul.f32 %v130, %v34
    %v132 = vsub.f32 %v27, %v131
    %v133 = vmul.f32 %v132, %v132
    %135 = vrot.lane.b32.xlu0 %v133, 32
    %v136 = vpop.permute.xlu0 %135
    %v138 = vsel %vm30, %v136, 0.0
    %139 = vadd.xlane.f32.xlu0 %v138
    %v140 = vpop.xlane.xlu0 %139
    %v141 = vmul.f32 %v140, %v34
    %v142 = vadd.f32 %v141, 1e-12
    %v143 = vrsqrt.pop %v142
    %v144 = vmul.f32 %v132, %v143
    %146 = vrot.lane.b32.xlu0 %v144, 32
    %v147 = vpop.permute.xlu0 %146
    %v149 = vmul.f32 %v49, %v147
    %v150 = vadd.f32 %v149, %v56
    %152 = vrot.lane.b32.xlu0 %v150, 96
    %v153 = vpop.permute.xlu0 %152
    %vm155 = vcmask 1044224
    %156 = vst.msk [vmem:[#allocation5] sm:$0xf] %vm155, %v153
    // Predicated region
    $region18: #{tpu_custom_call.1} parent=1 // pred_check
      _
    $region19: #{tpu_custom_call.1} parent=1 // pred_check_branch
      %158 = sbr.rel (0) target = $region21
    $region20: #{tpu_custom_call.1} parent=1 // pred_region
      %s160 = ssub.s32 64, 64
      %161 = vsyncadd [#allocation4], %s160
      %s163 = sshll.u32 [#allocation5], 4
      %s164 = int_to_ptr.vmem [resolvable:$true] %s163
      %166 = dma.vmem_to_hbm [thread:$0]  %s164, 64, %s3, [#allocation4]
    $region21: #{tpu_custom_call.1} parent=1 // pred_fallthru
      _
    // Predicated region
    $region22: #{tpu_custom_call.1} parent=1 // pred_check
      _
    $region23: #{tpu_custom_call.1} parent=1 // pred_check_branch
      %168 = sbr.rel (0) target = $region25
    $region24: #{tpu_custom_call.1} parent=1 // pred_region
      %169 = dma.done [#allocation4], 64
    $region25: #{tpu_custom_call.1} parent=1 // pred_fallthru
      _
    %170 = vsyncpa [#allocation3], 1
    %171 = vsyncpa [#allocation4], 1

</llo_original>
